<compile_context>
chip_gen: v7x
topology: tpu7x:2x2x1
jax: 0.10.0
libtpu: 0.0.40
codegen_flags: <defaults>
</compile_context>

<pallas_src>
import jax
import jax.numpy as jnp
from jax.experimental import pallas as pl
from jax.experimental.pallas import tpu as pltpu


def _rnn_kernel(x_ref, w_ih_t_ref, w_hh_t_ref, b_ref, w_fc_t_ref, b_fc_ref,
                out_ref, h_out_ref):
    """Whole-sequence RNN forward in a single invocation.

    x_ref     : (seq_len * batch_p, input_size)  time-major, batch padded to 8
    w_ih_t_ref: (input_size, hidden)             W_ih^T
    w_hh_t_ref: (hidden, hidden)                 W_hh^T
    b_ref     : (1, hidden)                      b_ih + b_hh (fused)
    w_fc_t_ref: (hidden, 1)                      W_fc^T
    b_fc_ref  : (1,)  in SMEM                    fc bias (scalar)
    out_ref   : (seq_len * batch_p, 1)
    h_out_ref : (batch_p, hidden)                final hidden state
    """
    batch_p = h_out_ref.shape[0]
    seq_len = x_ref.shape[0] // batch_p

    # (1) Hoisted input projection for ALL timesteps + fused RNN bias:
    #     one well-shaped matmul instead of seq_len tiny ones. Kept as a value
    #     (stays in vregs at this size) — no scratch round-trip.
    xp = (
        jnp.dot(x_ref[...], w_ih_t_ref[...], preferred_element_type=jnp.float32)
        + b_ref[...]
    )

    w_hh_t = w_hh_t_ref[...]                    # keep W_hh resident in vregs

    # (2) Recurrence. t=0 peeled: h0 == 0, so its h @ W_hh^T contributes nothing
    #     and is skipped, shortening the serial dependency chain by one MXU hop.
    #     seq_len is a small static trace-time constant -> fully unrolled,
    #     all slice offsets are static multiples of 8 (aligned, unmasked).
    h = jnp.tanh(xp[0:batch_p, :])
    hs = [h]
    for t in range(1, seq_len):
        pre = xp[t * batch_p:(t + 1) * batch_p, :] + jnp.dot(
            h, w_hh_t, preferred_element_type=jnp.float32)
        h = jnp.tanh(pre)
        hs.append(h)

    h_out_ref[...] = h                          # final hidden, written once

    # (3) Deferred fc projection: one matmul + one store for all timesteps;
    #     scalar bias added from SMEM.
    hs_slab = jnp.concatenate(hs, axis=0)       # (seq_len * batch_p, hidden)
    out_ref[...] = (
        jnp.dot(hs_slab, w_fc_t_ref[...], preferred_element_type=jnp.float32)
        + b_fc_ref[0]
    )


def rnn_forward(x, params):
    """x: (seq_len, batch, input_size) float32. Returns (out, h) like torch."""
    seq_len, batch, input_size = x.shape
    hidden_size = params["w_hh"].shape[0]

    # Pad batch up to a sublane multiple (8) with a single jnp.pad; padded rows
    # are harmless (row-independent matmuls, tanh-bounded) and sliced away below.
    batch_p = max(8, ((batch + 7) // 8) * 8)
    x_p = jnp.pad(x.astype(jnp.float32), ((0, 0), (0, batch_p - batch), (0, 0)))
    x2d = x_p.reshape(seq_len * batch_p, input_size)   # time-major, flattened

    # Parameter glue: pre-transpose for (M,K)@(K,N) MXU contractions, fuse the
    # two RNN biases (added once in the hoisted projection, not per step).
    w_ih_t = params["w_ih"].T                          # (input, hidden)
    w_hh_t = params["w_hh"].T                          # (hidden, hidden)
    b = (params["b_ih"] + params["b_hh"]).reshape(1, hidden_size)
    w_fc_t = params["w_fc"].T                          # (hidden, 1)
    b_fc = params["b_fc"].reshape(1)                   # scalar, goes to SMEM

    vmem = pl.BlockSpec(memory_space=pltpu.MemorySpace.VMEM)
    smem = pl.BlockSpec(memory_space=pltpu.MemorySpace.SMEM)

    out2d, h_p = pl.pallas_call(
        _rnn_kernel,
        out_shape=(
            jax.ShapeDtypeStruct((seq_len * batch_p, 1), jnp.float32),
            jax.ShapeDtypeStruct((batch_p, hidden_size), jnp.float32),
        ),
        in_specs=[vmem, vmem, vmem, vmem, vmem, smem],
        out_specs=(vmem, vmem),
    )(x2d, w_ih_t, w_hh_t, b, w_fc_t, b_fc)

    out = out2d.reshape(seq_len, batch_p, 1)[:, :batch, :]
    h = h_p[:batch, :][None, :, :]          # torch returns (num_layers, B, H)
    return out, h


def _reference(x, params):
    """Pure-JAX reference of the same forward pass (for correctness check)."""
    def step(h, x_t):
        h_new = jnp.tanh(x_t @ params["w_ih"].T + params["b_ih"]
                         + h @ params["w_hh"].T + params["b_hh"])
        return h_new, h_new

    h0 = jnp.zeros((x.shape[1], params["w_hh"].shape[0]), jnp.float32)
    h_final, hs = jax.lax.scan(step, h0, x)
    out = hs @ params["w_fc"].T + params["b_fc"]
    return out, h_final[None, :, :]


if __name__ == "__main__":
    seq_len, batch, input_size, hidden_size = 8, 2, 4, 32

    key = jax.random.PRNGKey(0)
    k = jax.random.split(key, 7)
    params = {
        # torch.nn.RNN parameter shapes: weight_ih_l0 (H, I), weight_hh_l0 (H, H)
        "w_ih": jax.random.normal(k[0], (hidden_size, input_size), jnp.float32) * 0.1,
        "w_hh": jax.random.normal(k[1], (hidden_size, hidden_size), jnp.float32) * 0.1,
        "b_ih": jax.random.normal(k[2], (hidden_size,), jnp.float32) * 0.1,
        "b_hh": jax.random.normal(k[3], (hidden_size,), jnp.float32) * 0.1,
        # torch.nn.Linear(hidden_size, 1): weight (1, H), bias (1,)
        "w_fc": jax.random.normal(k[4], (1, hidden_size), jnp.float32) * 0.1,
        "b_fc": jax.random.normal(k[5], (1,), jnp.float32) * 0.1,
    }
    x = jax.random.normal(k[6], (seq_len, batch, input_size), jnp.float32)

    out, h = rnn_forward(x, params)
    jax.block_until_ready((out, h))

    out_ref, h_ref = _reference(x, params)
    assert out.shape == (seq_len, batch, 1)
    assert h.shape == (1, batch, hidden_size)
    assert jnp.allclose(out, out_ref, atol=1e-5), "output mismatch vs reference"
    assert jnp.allclose(h, h_ref, atol=1e-5), "hidden mismatch vs reference"

    print("KERNEL_OK")
</pallas_src>

<mosaic_0001>
module attributes {stable_mosaic.version = 11 : i64} {
  func.func @_rnn_kernel(%arg0: memref<64x4xf32, #tpu.memory_space<vmem>>, %arg1: memref<4x32xf32, #tpu.memory_space<vmem>>, %arg2: memref<32x32xf32, #tpu.memory_space<vmem>>, %arg3: memref<1x32xf32, #tpu.memory_space<vmem>>, %arg4: memref<32x1xf32, #tpu.memory_space<vmem>>, %arg5: memref<1xf32, #tpu.memory_space<smem>>, %arg6: memref<64x1xf32, #tpu.memory_space<vmem>>, %arg7: memref<8x32xf32, #tpu.memory_space<vmem>>) attributes {dimension_semantics = [], scalar_prefetch = 0 : i64, scratch_operands = 0 : i64, tpu.core_type = #tpu.core_type<tc>} {
    %c0 = arith.constant 0 : index
    %c0_0 = arith.constant 0 : index
    %0 = vector.load %arg0[%c0, %c0_0] : memref<64x4xf32, #tpu.memory_space<vmem>>, vector<64x4xf32>
    %c0_1 = arith.constant 0 : index
    %c0_2 = arith.constant 0 : index
    %1 = vector.load %arg1[%c0_1, %c0_2] : memref<4x32xf32, #tpu.memory_space<vmem>>, vector<4x32xf32>
    %cst = arith.constant dense<0.000000e+00> : vector<64x32xf32>
    %2 = tpu.matmul %0, %1, %cst {dimension_numbers = #tpu.dot_dimension_numbers<[1], [0], [0], [1], [0, 0, 1, 1], [], []>} : vector<64x4xf32>, vector<4x32xf32>, vector<64x32xf32> -> vector<64x32xf32>
    %c0_3 = arith.constant 0 : index
    %c0_4 = arith.constant 0 : index
    %3 = vector.load %arg3[%c0_3, %c0_4] : memref<1x32xf32, #tpu.memory_space<vmem>>, vector<1x32xf32>
    %4 = vector.broadcast %3 : vector<1x32xf32> to vector<64x32xf32>
    %5 = arith.addf %2, %4 : vector<64x32xf32>
    %c0_5 = arith.constant 0 : index
    %c0_6 = arith.constant 0 : index
    %6 = vector.load %arg2[%c0_5, %c0_6] : memref<32x32xf32, #tpu.memory_space<vmem>>, vector<32x32xf32>
    %7 = vector.extract_strided_slice %5 {offsets = [0, 0], sizes = [8, 32], strides = [1, 1]} : vector<64x32xf32> to vector<8x32xf32>
    %8 = math.tanh %7 : vector<8x32xf32>
    %9 = vector.extract_strided_slice %5 {offsets = [8, 0], sizes = [8, 32], strides = [1, 1]} : vector<64x32xf32> to vector<8x32xf32>
    %cst_7 = arith.constant dense<0.000000e+00> : vector<8x32xf32>
    %10 = tpu.matmul %8, %6, %cst_7 {dimension_numbers = #tpu.dot_dimension_numbers<[1], [0], [0], [1], [0, 0, 1, 1], [], []>} : vector<8x32xf32>, vector<32x32xf32>, vector<8x32xf32> -> vector<8x32xf32>
    %11 = arith.addf %9, %10 : vector<8x32xf32>
    %12 = math.tanh %11 : vector<8x32xf32>
    %13 = vector.extract_strided_slice %5 {offsets = [16, 0], sizes = [8, 32], strides = [1, 1]} : vector<64x32xf32> to vector<8x32xf32>
    %cst_8 = arith.constant dense<0.000000e+00> : vector<8x32xf32>
    %14 = tpu.matmul %12, %6, %cst_8 {dimension_numbers = #tpu.dot_dimension_numbers<[1], [0], [0], [1], [0, 0, 1, 1], [], []>} : vector<8x32xf32>, vector<32x32xf32>, vector<8x32xf32> -> vector<8x32xf32>
    %15 = arith.addf %13, %14 : vector<8x32xf32>
    %16 = math.tanh %15 : vector<8x32xf32>
    %17 = vector.extract_strided_slice %5 {offsets = [24, 0], sizes = [8, 32], strides = [1, 1]} : vector<64x32xf32> to vector<8x32xf32>
    %cst_9 = arith.constant dense<0.000000e+00> : vector<8x32xf32>
    %18 = tpu.matmul %16, %6, %cst_9 {dimension_numbers = #tpu.dot_dimension_numbers<[1], [0], [0], [1], [0, 0, 1, 1], [], []>} : vector<8x32xf32>, vector<32x32xf32>, vector<8x32xf32> -> vector<8x32xf32>
    %19 = arith.addf %17, %18 : vector<8x32xf32>
    %20 = math.tanh %19 : vector<8x32xf32>
    %21 = vector.extract_strided_slice %5 {offsets = [32, 0], sizes = [8, 32], strides = [1, 1]} : vector<64x32xf32> to vector<8x32xf32>
    %cst_10 = arith.constant dense<0.000000e+00> : vector<8x32xf32>
    %22 = tpu.matmul %20, %6, %cst_10 {dimension_numbers = #tpu.dot_dimension_numbers<[1], [0], [0], [1], [0, 0, 1, 1], [], []>} : vector<8x32xf32>, vector<32x32xf32>, vector<8x32xf32> -> vector<8x32xf32>
    %23 = arith.addf %21, %22 : vector<8x32xf32>
    %24 = math.tanh %23 : vector<8x32xf32>
    %25 = vector.extract_strided_slice %5 {offsets = [40, 0], sizes = [8, 32], strides = [1, 1]} : vector<64x32xf32> to vector<8x32xf32>
    %cst_11 = arith.constant dense<0.000000e+00> : vector<8x32xf32>
    %26 = tpu.matmul %24, %6, %cst_11 {dimension_numbers = #tpu.dot_dimension_numbers<[1], [0], [0], [1], [0, 0, 1, 1], [], []>} : vector<8x32xf32>, vector<32x32xf32>, vector<8x32xf32> -> vector<8x32xf32>
    %27 = arith.addf %25, %26 : vector<8x32xf32>
    %28 = math.tanh %27 : vector<8x32xf32>
    %29 = vector.extract_strided_slice %5 {offsets = [48, 0], sizes = [8, 32], strides = [1, 1]} : vector<64x32xf32> to vector<8x32xf32>
    %cst_12 = arith.constant dense<0.000000e+00> : vector<8x32xf32>
    %30 = tpu.matmul %28, %6, %cst_12 {dimension_numbers = #tpu.dot_dimension_numbers<[1], [0], [0], [1], [0, 0, 1, 1], [], []>} : vector<8x32xf32>, vector<32x32xf32>, vector<8x32xf32> -> vector<8x32xf32>
    %31 = arith.addf %29, %30 : vector<8x32xf32>
    %32 = math.tanh %31 : vector<8x32xf32>
    %33 = vector.extract_strided_slice %5 {offsets = [56, 0], sizes = [8, 32], strides = [1, 1]} : vector<64x32xf32> to vector<8x32xf32>
    %cst_13 = arith.constant dense<0.000000e+00> : vector<8x32xf32>
    %34 = tpu.matmul %32, %6, %cst_13 {dimension_numbers = #tpu.dot_dimension_numbers<[1], [0], [0], [1], [0, 0, 1, 1], [], []>} : vector<8x32xf32>, vector<32x32xf32>, vector<8x32xf32> -> vector<8x32xf32>
    %35 = arith.addf %33, %34 : vector<8x32xf32>
    %36 = math.tanh %35 : vector<8x32xf32>
    %c0_14 = arith.constant 0 : index
    %c0_15 = arith.constant 0 : index
    %37 = vector.load %arg7[%c0_14, %c0_15] : memref<8x32xf32, #tpu.memory_space<vmem>>, vector<8x32xf32>
    tpu.vector_store %arg7[%c0_14, %c0_15], %36 {strides = array<i32>} : memref<8x32xf32, #tpu.memory_space<vmem>>, vector<8x32xf32>,
    %38 = tpu.concatenate %8, %12, %16, %20, %24, %28, %32, %36 in 0 : vector<8x32xf32>, vector<8x32xf32>, vector<8x32xf32>, vector<8x32xf32>, vector<8x32xf32>, vector<8x32xf32>, vector<8x32xf32>, vector<8x32xf32> -> vector<64x32xf32>
    %c0_16 = arith.constant 0 : index
    %c0_17 = arith.constant 0 : index
    %39 = vector.load %arg4[%c0_16, %c0_17] : memref<32x1xf32, #tpu.memory_space<vmem>>, vector<32x1xf32>
    %cst_18 = arith.constant dense<0.000000e+00> : vector<64x1xf32>
    %40 = tpu.matmul %38, %39, %cst_18 {dimension_numbers = #tpu.dot_dimension_numbers<[1], [0], [0], [1], [0, 0, 1, 1], [], []>} : vector<64x32xf32>, vector<32x1xf32>, vector<64x1xf32> -> vector<64x1xf32>
    %c0_19 = arith.constant 0 : index
    %41 = memref.load %arg5[%c0_19] : memref<1xf32, #tpu.memory_space<smem>>
    %42 = vector.broadcast %41 : f32 to vector<64x1xf32>
    %43 = arith.addf %40, %42 : vector<64x1xf32>
    %c0_20 = arith.constant 0 : index
    %c0_21 = arith.constant 0 : index
    %44 = vector.load %arg6[%c0_20, %c0_21] : memref<64x1xf32, #tpu.memory_space<vmem>>, vector<64x1xf32>
    tpu.vector_store %arg6[%c0_20, %c0_21], %43 {strides = array<i32>} : memref<64x1xf32, #tpu.memory_space<vmem>>, vector<64x1xf32>,
    return
  }
}

</mosaic_0001>

<llo_original>
// kernel: tpu_custom_call.1
$region0: #{tpu_custom_call.1}
  #allocation0 [shape = 'u32[]', space=smem, size = 0x4, offset = 0x4, fixed_abs, tag = 'smem constant byte address 0x4 - core index']
  #allocation1 [shape = 'u32[144,128]{1,0:T(1,128)}', space=vmem, size = 0x12000, scoped, tag = 'internal scratch']
  #allocation2 [shape = 'f32[1]{0:T(128)S(6)}', space=smem, size = 0x200, scoped, tag = 'scoped memory for tpu_custom_call.1']
  %s0 = inlined_call_operand.vmem [shape: f32[64,4], index: 0, kind: input, shape index: {}]
  %s1 = inlined_call_operand.vmem [shape: f32[4,32], index: 1, kind: input, shape index: {}]
  %s2 = inlined_call_operand.vmem [shape: f32[32,32], index: 2, kind: input, shape index: {}]
  %s3 = inlined_call_operand.vmem [shape: f32[1,32], index: 3, kind: input, shape index: {}]
  %s4 = inlined_call_operand.vmem [shape: f32[32,1], index: 4, kind: input, shape index: {}]
  %s5 = inlined_call_operand.<no memory space> [shape: f32[1], index: 5, kind: input, shape index: {}]
  %s6 = inlined_call_operand.vmem [shape: f32[64,1], index: 6, kind: output, shape index: {0}]
  %s7 = inlined_call_operand.hbm [shape: f32[8,32], index: 7, kind: output, shape index: {1}]
  %8 = xla_tuple %s6, %s7
  %s9 = sld [smem:[#allocation0]]
  $region42: #{tpu_custom_call.1} parent=0
    _
  %s11 = ssub.s32 1, %s9
  %s12 = scalar_select 0, %s11, %s9
  %13 = sst [smem:[#allocation2]] %s5
  $region1: #{tpu_custom_call.1} parent=0
    #allocation3 [shape = 'u8[4096]{0}', space=vmem, size = 0x1000, scoped, tag = 'output window, operand 1, single buffered']
    #allocation4 [shape = 's32[1]{0}', space=sflag, size = 0x4, scoped, tag = 'scoped memory for tpu_custom_call.1']
    %14 = vsyncpa [#allocation4], 0
    // Predicated region
    $region2: #{tpu_custom_call.1} parent=1 // pred_check
      _
    $region3: #{tpu_custom_call.1} parent=1 // pred_check_branch
      %16 = sbr.rel (0) target = $region5
    $region4: #{tpu_custom_call.1} parent=1 // pred_region
      _
    $region5: #{tpu_custom_call.1} parent=1 // pred_fallthru
      _
    // Predicated region
    $region6: #{tpu_custom_call.1} parent=1 // pred_check
      _
    $region7: #{tpu_custom_call.1} parent=1 // pred_check_branch
      %18 = sbr.rel (0) target = $region9
    $region8: #{tpu_custom_call.1} parent=1 // pred_region
      _
    $region9: #{tpu_custom_call.1} parent=1 // pred_fallthru
      _
    // Predicated region
    $region10: #{tpu_custom_call.1} parent=1 // pred_check
      _
    $region11: #{tpu_custom_call.1} parent=1 // pred_check_branch
      %20 = sbr.rel (0) target = $region13
    $region12: #{tpu_custom_call.1} parent=1 // pred_region
      _
    $region13: #{tpu_custom_call.1} parent=1 // pred_fallthru
      _
    // Predicated region
    $region14: #{tpu_custom_call.1} parent=1 // pred_check
      _
    $region15: #{tpu_custom_call.1} parent=1 // pred_check_branch
      %22 = sbr.rel (0) target = $region17
    $region16: #{tpu_custom_call.1} parent=1 // pred_region
      _
    $region17: #{tpu_custom_call.1} parent=1 // pred_fallthru
      _
    // Predicated region
    $region18: #{tpu_custom_call.1} parent=1 // pred_check
      _
    $region19: #{tpu_custom_call.1} parent=1 // pred_check_branch
      %24 = sbr.rel (0) target = $region21
    $region20: #{tpu_custom_call.1} parent=1 // pred_region
      _
    $region21: #{tpu_custom_call.1} parent=1 // pred_fallthru
      _
    // Predicated region
    $region22: #{tpu_custom_call.1} parent=1 // pred_check
      _
    $region23: #{tpu_custom_call.1} parent=1 // pred_check_branch
      %26 = sbr.rel (0) target = $region25
    $region24: #{tpu_custom_call.1} parent=1 // pred_region
      _
    $region25: #{tpu_custom_call.1} parent=1 // pred_fallthru
      _
    %v27 = vld [vmem:[%s0] sm:$0xff]
    %v28 = vld [vmem:[%s0 + $0x8] sm:$0xff]
    %v29 = vld [vmem:[%s0 + $0x10] sm:$0xff]
    %v30 = vld [vmem:[%s0 + $0x18] sm:$0xff]
    %v31 = vld [vmem:[%s0 + $0x20] sm:$0xff]
    %v32 = vld [vmem:[%s0 + $0x28] sm:$0xff]
    %v33 = vld [vmem:[%s0 + $0x30] sm:$0xff]
    %v34 = vld [vmem:[%s0 + $0x38] sm:$0xff]
    %v35 = vld [vmem:[%s1] sm:$0xf]
    %v36 = vld [vmem:[%s3] sm:$0x1]
    %v38 = vlaneseq
    %v39 = vshrl.u32 %v38, 7
    %v40 = vsub.s32 0, %v39
    %v41 = vrot.slane %v36, %v40
    %vm43 = vcmask 31744
    %v45 = vsel %vm43, %v27, 0
    %v48 = vsel %vm43, %v28, 0
    %v51 = vsel %vm43, %v29, 0
    %v54 = vsel %vm43, %v30, 0
    %v57 = vsel %vm43, %v31, 0
    %v60 = vsel %vm43, %v32, 0
    %v63 = vsel %vm43, %v33, 0
    %v66 = vsel %vm43, %v34, 0
    %vm68 = vcmask 1043456
    %v70 = vsel %vm68, %v35, 0
    %72 = vmatprep.subr.mxu0 0.0
    %73 = vmatpush1.msra.mxu0 %v70
    %74 = vmatprep.subr.mxu0 0.0
    %75 = vmatpush1.msra.mxu0 0.0
    %76 = vmatprep.subr.mxu0 0.0
    %77 = vmatpush1.msra.mxu0 0.0
    %78 = vmatprep.subr.mxu0 0.0
    %79 = vmatpush1.msra.mxu0 0.0
    %80 = vmatprep.subr.mxu0 0.0
    %81 = vmatpush1.msra.mxu0 0.0
    %82 = vmatprep.subr.mxu0 0.0
    %83 = vmatpush1.msra.mxu0 0.0
    %84 = vmatprep.subr.mxu0 0.0
    %85 = vmatpush1.msra.mxu0 0.0
    %86 = vmatprep.subr.mxu0 0.0
    %87 = vmatpush1.msra.mxu0 0.0
    %88 = vmatprep.subr.mxu0 0.0
    %89 = vmatpush1.msra.mxu0 0.0
    %90 = vmatprep.subr.mxu0 0.0
    %91 = vmatpush1.msra.mxu0 0.0
    %92 = vmatprep.subr.mxu0 0.0
    %93 = vmatpush1.msra.mxu0 0.0
    %94 = vmatprep.subr.mxu0 0.0
    %95 = vmatpush1.msra.mxu0 0.0
    %96 = vmatprep.subr.mxu0 0.0
    %97 = vmatpush1.msra.mxu0 0.0
    %98 = vmatprep.subr.mxu0 0.0
    %99 = vmatpush1.msra.mxu0 0.0
    %100 = vmatprep.subr.mxu0 0.0
    %101 = vmatpush1.msra.mxu0 0.0
    %102 = vmatprep.subr.mxu0 0.0
    %103 = vmatpush1.msra.mxu0 0.0
    %104 = vmatprep.subr.mxu0 0.0
    %105 = vmatpush1.msra.mxu0 0.0
    %106 = vmatprep.subr.mxu0 0.0
    %107 = vmatpush1.msra.mxu0 0.0
    %108 = vmatprep.subr.mxu0 0.0
    %109 = vmatpush1.msra.mxu0 0.0
    %110 = vmatprep.subr.mxu0 0.0
    %111 = vmatpush1.msra.mxu0 0.0
    %112 = vmatprep.subr.mxu0 0.0
    %113 = vmatpush1.msra.mxu0 0.0
    %114 = vmatprep.subr.mxu0 0.0
    %115 = vmatpush1.msra.mxu0 0.0
    %116 = vmatprep.subr.mxu0 0.0
    %117 = vmatpush1.msra.mxu0 0.0
    %118 = vmatprep.subr.mxu0 0.0
    %119 = vmatpush1.msra.mxu0 0.0
    %120 = vmatprep.subr.mxu0 0.0
    %121 = vmatpush1.msra.mxu0 0.0
    %122 = vmatprep.subr.mxu0 0.0
    %123 = vmatpush1.msra.mxu0 0.0
    %124 = vmatprep.subr.mxu0 0.0
    %125 = vmatpush1.msra.mxu0 0.0
    %126 = vmatprep.subr.mxu0 0.0
    %127 = vmatpush1.msra.mxu0 0.0
    %128 = vmatprep.subr.mxu0 0.0
    %129 = vmatpush1.msra.mxu0 0.0
    %130 = vmatprep.subr.mxu0 0.0
    %131 = vmatpush1.msra.mxu0 0.0
    %132 = vmatprep.subr.mxu0 0.0
    %133 = vmatpush1.msra.mxu0 0.0
    %134 = vmatprep.subr.mxu0 0.0
    %135 = vmatpush1.msra.mxu0 0.0
    %136 = vmatprep.mubr.f32.mxu0 0.0
    %137 = vmatmul.mubr.f32.gmra.mrb[0].mxu0 %v45
    %v138 = vpop.f32.mrb[0].mxu0
    %v139 = vadd.f32 %v41, %v138
    %v140 = vpop.f32.mrb[0].mxu0
    %141 = vmatprep.mubr.f32.mxu0 0.0
    %142 = vmatmul.mubr.f32.gmra.mrb[0].mxu0 %v48
    %v143 = vpop.f32.mrb[0].mxu0
    %v144 = vadd.f32 %v41, %v143
    %v145 = vpop.f32.mrb[0].mxu0
    %146 = vmatprep.mubr.f32.mxu0 0.0
    %147 = vmatmul.mubr.f32.gmra.mrb[0].mxu0 %v51
    %v148 = vpop.f32.mrb[0].mxu0
    %v149 = vadd.f32 %v41, %v148
    %v150 = vpop.f32.mrb[0].mxu0
    %151 = vmatprep.mubr.f32.mxu0 0.0
    %152 = vmatmul.mubr.f32.gmra.mrb[0].mxu0 %v54
    %v153 = vpop.f32.mrb[0].mxu0
    %v154 = vadd.f32 %v41, %v153
    %v155 = vpop.f32.mrb[0].mxu0
    %156 = vmatprep.mubr.f32.mxu0 0.0
    %157 = vmatmul.mubr.f32.gmra.mrb[0].mxu0 %v57
    %v158 = vpop.f32.mrb[0].mxu0
    %v159 = vadd.f32 %v41, %v158
    %v160 = vpop.f32.mrb[0].mxu0
    %161 = vmatprep.mubr.f32.mxu0 0.0
    %162 = vmatmul.mubr.f32.gmra.mrb[0].mxu0 %v60
    %v163 = vpop.f32.mrb[0].mxu0
    %v164 = vadd.f32 %v41, %v163
    %v165 = vpop.f32.mrb[0].mxu0
    %166 = vmatprep.mubr.f32.mxu0 0.0
    %167 = vmatmul.mubr.f32.gmra.mrb[0].mxu0 %v63
    %v168 = vpop.f32.mrb[0].mxu0
    %v169 = vadd.f32 %v41, %v168
    %v170 = vpop.f32.mrb[0].mxu0
    %171 = vmatprep.mubr.f32.mxu0 0.0
    %172 = vmatmul.mubr.f32.gmra.mrb[0].mxu0 %v66
    %v173 = vpop.f32.mrb[0].mxu0
    %v174 = vadd.f32 %v41, %v173
    %v175 = vpop.f32.mrb[0].mxu0
    %176 = vdwg.mxu0
    %v177 = vld [vmem:[%s2] sm:$0xff]
    %v178 = vld [vmem:[%s2 + $0x8] sm:$0xff]
    %v179 = vld [vmem:[%s2 + $0x10] sm:$0xff]
    %v180 = vld [vmem:[%s2 + $0x18] sm:$0xff]
    %v181 = vtanh.pop %v139
    %vm182 = vcmask 261120
    %v184 = vsel %vm182, %v181, 0
    %186 = vmatprep.subr.mxu0 0.0
    %187 = vmatpush1.msra.mxu0 %v177
    %188 = vmatprep.subr.mxu0 0.0
    %189 = vmatpush1.msra.mxu0 %v178
    %190 = vmatprep.subr.mxu0 0.0
    %191 = vmatpush1.msra.mxu0 %v179
    %192 = vmatprep.subr.mxu0 0.0
    %193 = vmatpush1.msra.mxu0 %v180
    %194 = vmatprep.subr.mxu0 0.0
    %195 = vmatpush1.msra.mxu0 0.0
    %196 = vmatprep.subr.mxu0 0.0
    %197 = vmatpush1.msra.mxu0 0.0
    %198 = vmatprep.subr.mxu0 0.0
    %199 = vmatpush1.msra.mxu0 0.0
    %200 = vmatprep.subr.mxu0 0.0
    %201 = vmatpush1.msra.mxu0 0.0
    %202 = vmatprep.subr.mxu0 0.0
    %203 = vmatpush1.msra.mxu0 0.0
    %204 = vmatprep.subr.mxu0 0.0
    %205 = vmatpush1.msra.mxu0 0.0
    %206 = vmatprep.subr.mxu0 0.0
    %207 = vmatpush1.msra.mxu0 0.0
    %208 = vmatprep.subr.mxu0 0.0
    %209 = vmatpush1.msra.mxu0 0.0
    %210 = vmatprep.subr.mxu0 0.0
    %211 = vmatpush1.msra.mxu0 0.0
    %212 = vmatprep.subr.mxu0 0.0
    %213 = vmatpush1.msra.mxu0 0.0
    %214 = vmatprep.subr.mxu0 0.0
    %215 = vmatpush1.msra.mxu0 0.0
    %216 = vmatprep.subr.mxu0 0.0
    %217 = vmatpush1.msra.mxu0 0.0
    %218 = vmatprep.subr.mxu0 0.0
    %219 = vmatpush1.msra.mxu0 0.0
    %220 = vmatprep.subr.mxu0 0.0
    %221 = vmatpush1.msra.mxu0 0.0
    %222 = vmatprep.subr.mxu0 0.0
    %223 = vmatpush1.msra.mxu0 0.0
    %224 = vmatprep.subr.mxu0 0.0
    %225 = vmatpush1.msra.mxu0 0.0
    %226 = vmatprep.subr.mxu0 0.0
    %227 = vmatpush1.msra.mxu0 0.0
    %228 = vmatprep.subr.mxu0 0.0
    %229 = vmatpush1.msra.mxu0 0.0
    %230 = vmatprep.subr.mxu0 0.0
    %231 = vmatpush1.msra.mxu0 0.0
    %232 = vmatprep.subr.mxu0 0.0
    %233 = vmatpush1.msra.mxu0 0.0
    %234 = vmatprep.subr.mxu0 0.0
    %235 = vmatpush1.msra.mxu0 0.0
    %236 = vmatprep.subr.mxu0 0.0
    %237 = vmatpush1.msra.mxu0 0.0
    %238 = vmatprep.subr.mxu0 0.0
    %239 = vmatpush1.msra.mxu0 0.0
    %240 = vmatprep.subr.mxu0 0.0
    %241 = vmatpush1.msra.mxu0 0.0
    %242 = vmatprep.subr.mxu0 0.0
    %243 = vmatpush1.msra.mxu0 0.0
    %244 = vmatprep.subr.mxu0 0.0
    %245 = vmatpush1.msra.mxu0 0.0
    %246 = vmatprep.subr.mxu0 0.0
    %247 = vmatpush1.msra.mxu0 0.0
    %248 = vmatprep.subr.mxu0 0.0
    %249 = vmatpush1.msra.mxu0 0.0
    %250 = vmatprep.mubr.f32.mxu0 0.0
    %251 = vmatmul.mubr.f32.gmra.mrb[0].mxu0 %v184
    %v252 = vpop.f32.mrb[0].mxu0
    %v253 = vadd.f32 0.0, %v252
    %v254 = vpop.f32.mrb[0].mxu0
    %255 = vdwg.mxu0
    %v256 = vadd.f32 %v144, %v253
    %v257 = vtanh.pop %v256
    %v259 = vsel %vm182, %v257, 0
    %261 = vmatprep.subr.mxu0 0.0
    %262 = vmatpush1.msra.mxu0 %v177
    %263 = vmatprep.subr.mxu0 0.0
    %264 = vmatpush1.msra.mxu0 %v178
    %265 = vmatprep.subr.mxu0 0.0
    %266 = vmatpush1.msra.mxu0 %v179
    %267 = vmatprep.subr.mxu0 0.0
    %268 = vmatpush1.msra.mxu0 %v180
    %269 = vmatprep.subr.mxu0 0.0
    %270 = vmatpush1.msra.mxu0 0.0
    %271 = vmatprep.subr.mxu0 0.0
    %272 = vmatpush1.msra.mxu0 0.0
    %273 = vmatprep.subr.mxu0 0.0
    %274 = vmatpush1.msra.mxu0 0.0
    %275 = vmatprep.subr.mxu0 0.0
    %276 = vmatpush1.msra.mxu0 0.0
    %277 = vmatprep.subr.mxu0 0.0
    %278 = vmatpush1.msra.mxu0 0.0
    %279 = vmatprep.subr.mxu0 0.0
    %280 = vmatpush1.msra.mxu0 0.0
    %281 = vmatprep.subr.mxu0 0.0
    %282 = vmatpush1.msra.mxu0 0.0
    %283 = vmatprep.subr.mxu0 0.0
    %284 = vmatpush1.msra.mxu0 0.0
    %285 = vmatprep.subr.mxu0 0.0
    %286 = vmatpush1.msra.mxu0 0.0
    %287 = vmatprep.subr.mxu0 0.0
    %288 = vmatpush1.msra.mxu0 0.0
    %289 = vmatprep.subr.mxu0 0.0
    %290 = vmatpush1.msra.mxu0 0.0
    %291 = vmatprep.subr.mxu0 0.0
    %292 = vmatpush1.msra.mxu0 0.0
    %293 = vmatprep.subr.mxu0 0.0
    %294 = vmatpush1.msra.mxu0 0.0
    %295 = vmatprep.subr.mxu0 0.0
    %296 = vmatpush1.msra.mxu0 0.0
    %297 = vmatprep.subr.mxu0 0.0
    %298 = vmatpush1.msra.mxu0 0.0
    %299 = vmatprep.subr.mxu0 0.0
    %300 = vmatpush1.msra.mxu0 0.0
    %301 = vmatprep.subr.mxu0 0.0
    %302 = vmatpush1.msra.mxu0 0.0
    %303 = vmatprep.subr.mxu0 0.0
    %304 = vmatpush1.msra.mxu0 0.0
    %305 = vmatprep.subr.mxu0 0.0
    %306 = vmatpush1.msra.mxu0 0.0
    %307 = vmatprep.subr.mxu0 0.0
    %308 = vmatpush1.msra.mxu0 0.0
    %309 = vmatprep.subr.mxu0 0.0
    %310 = vmatpush1.msra.mxu0 0.0
    %311 = vmatprep.subr.mxu0 0.0
    %312 = vmatpush1.msra.mxu0 0.0
    %313 = vmatprep.subr.mxu0 0.0
    %314 = vmatpush1.msra.mxu0 0.0
    %315 = vmatprep.subr.mxu0 0.0
    %316 = vmatpush1.msra.mxu0 0.0
    %317 = vmatprep.subr.mxu0 0.0
    %318 = vmatpush1.msra.mxu0 0.0
    %319 = vmatprep.subr.mxu0 0.0
    %320 = vmatpush1.msra.mxu0 0.0
    %321 = vmatprep.subr.mxu0 0.0
    %322 = vmatpush1.msra.mxu0 0.0
    %323 = vmatprep.subr.mxu0 0.0
    %324 = vmatpush1.msra.mxu0 0.0
    %325 = vmatprep.mubr.f32.mxu0 0.0
    %326 = vmatmul.mubr.f32.gmra.mrb[0].mxu0 %v259
    %v327 = vpop.f32.mrb[0].mxu0
    %v328 = vadd.f32 0.0, %v327
    %v329 = vpop.f32.mrb[0].mxu0
    %330 = vdwg.mxu0
    %v331 = vadd.f32 %v149, %v328
    %v332 = vtanh.pop %v331
    %v334 = vsel %vm182, %v332, 0
    %336 = vmatprep.subr.mxu0 0.0
    %337 = vmatpush1.msra.mxu0 %v177
    %338 = vmatprep.subr.mxu0 0.0
    %339 = vmatpush1.msra.mxu0 %v178
    %340 = vmatprep.subr.mxu0 0.0
    %341 = vmatpush1.msra.mxu0 %v179
    %342 = vmatprep.subr.mxu0 0.0
    %343 = vmatpush1.msra.mxu0 %v180
    %344 = vmatprep.subr.mxu0 0.0
    %345 = vmatpush1.msra.mxu0 0.0
    %346 = vmatprep.subr.mxu0 0.0
    %347 = vmatpush1.msra.mxu0 0.0
    %348 = vmatprep.subr.mxu0 0.0
    %349 = vmatpush1.msra.mxu0 0.0
    %350 = vmatprep.subr.mxu0 0.0
    %351 = vmatpush1.msra.mxu0 0.0
    %352 = vmatprep.subr.mxu0 0.0
    %353 = vmatpush1.msra.mxu0 0.0
    %354 = vmatprep.subr.mxu0 0.0
    %355 = vmatpush1.msra.mxu0 0.0
    %356 = vmatprep.subr.mxu0 0.0
    %357 = vmatpush1.msra.mxu0 0.0
    %358 = vmatprep.subr.mxu0 0.0
    %359 = vmatpush1.msra.mxu0 0.0
    %360 = vmatprep.subr.mxu0 0.0
    %361 = vmatpush1.msra.mxu0 0.0
    %362 = vmatprep.subr.mxu0 0.0
    %363 = vmatpush1.msra.mxu0 0.0
    %364 = vmatprep.subr.mxu0 0.0
    %365 = vmatpush1.msra.mxu0 0.0
    %366 = vmatprep.subr.mxu0 0.0
    %367 = vmatpush1.msra.mxu0 0.0
    %368 = vmatprep.subr.mxu0 0.0
    %369 = vmatpush1.msra.mxu0 0.0
    %370 = vmatprep.subr.mxu0 0.0
    %371 = vmatpush1.msra.mxu0 0.0
    %372 = vmatprep.subr.mxu0 0.0
    %373 = vmatpush1.msra.mxu0 0.0
    %374 = vmatprep.subr.mxu0 0.0
    %375 = vmatpush1.msra.mxu0 0.0
    %376 = vmatprep.subr.mxu0 0.0
    %377 = vmatpush1.msra.mxu0 0.0
    %378 = vmatprep.subr.mxu0 0.0
    %379 = vmatpush1.msra.mxu0 0.0
    %380 = vmatprep.subr.mxu0 0.0
    %381 = vmatpush1.msra.mxu0 0.0
    %382 = vmatprep.subr.mxu0 0.0
    %383 = vmatpush1.msra.mxu0 0.0
    %384 = vmatprep.subr.mxu0 0.0
    %385 = vmatpush1.msra.mxu0 0.0
    %386 = vmatprep.subr.mxu0 0.0
    %387 = vmatpush1.msra.mxu0 0.0
    %388 = vmatprep.subr.mxu0 0.0
    %389 = vmatpush1.msra.mxu0 0.0
    %390 = vmatprep.subr.mxu0 0.0
    %391 = vmatpush1.msra.mxu0 0.0
    %392 = vmatprep.subr.mxu0 0.0
    %393 = vmatpush1.msra.mxu0 0.0
    %394 = vmatprep.subr.mxu0 0.0
    %395 = vmatpush1.msra.mxu0 0.0
    %396 = vmatprep.subr.mxu0 0.0
    %397 = vmatpush1.msra.mxu0 0.0
    %398 = vmatprep.subr.mxu0 0.0
    %399 = vmatpush1.msra.mxu0 0.0
    %400 = vmatprep.mubr.f32.mxu0 0.0
    %401 = vmatmul.mubr.f32.gmra.mrb[0].mxu0 %v334
    %v402 = vpop.f32.mrb[0].mxu0
    %v403 = vadd.f32 0.0, %v402
    %v404 = vpop.f32.mrb[0].mxu0
    %405 = vdwg.mxu0
    %v406 = vadd.f32 %v154, %v403
    %v407 = vtanh.pop %v406
    %v409 = vsel %vm182, %v407, 0
    %411 = vmatprep.subr.mxu0 0.0
    %412 = vmatpush1.msra.mxu0 %v177
    %413 = vmatprep.subr.mxu0 0.0
    %414 = vmatpush1.msra.mxu0 %v178
    %415 = vmatprep.subr.mxu0 0.0
    %416 = vmatpush1.msra.mxu0 %v179
    %417 = vmatprep.subr.mxu0 0.0
    %418 = vmatpush1.msra.mxu0 %v180
    %419 = vmatprep.subr.mxu0 0.0
    %420 = vmatpush1.msra.mxu0 0.0
    %421 = vmatprep.subr.mxu0 0.0
    %422 = vmatpush1.msra.mxu0 0.0
    %423 = vmatprep.subr.mxu0 0.0
    %424 = vmatpush1.msra.mxu0 0.0
    %425 = vmatprep.subr.mxu0 0.0
    %426 = vmatpush1.msra.mxu0 0.0
    %427 = vmatprep.subr.mxu0 0.0
    %428 = vmatpush1.msra.mxu0 0.0
    %429 = vmatprep.subr.mxu0 0.0
    %430 = vmatpush1.msra.mxu0 0.0
    %431 = vmatprep.subr.mxu0 0.0
    %432 = vmatpush1.msra.mxu0 0.0
    %433 = vmatprep.subr.mxu0 0.0
    %434 = vmatpush1.msra.mxu0 0.0
    %435 = vmatprep.subr.mxu0 0.0
    %436 = vmatpush1.msra.mxu0 0.0
    %437 = vmatprep.subr.mxu0 0.0
    %438 = vmatpush1.msra.mxu0 0.0
    %439 = vmatprep.subr.mxu0 0.0
    %440 = vmatpush1.msra.mxu0 0.0
    %441 = vmatprep.subr.mxu0 0.0
    %442 = vmatpush1.msra.mxu0 0.0
    %443 = vmatprep.subr.mxu0 0.0
    %444 = vmatpush1.msra.mxu0 0.0
    %445 = vmatprep.subr.mxu0 0.0
    %446 = vmatpush1.msra.mxu0 0.0
    %447 = vmatprep.subr.mxu0 0.0
    %448 = vmatpush1.msra.mxu0 0.0
    %449 = vmatprep.subr.mxu0 0.0
    %450 = vmatpush1.msra.mxu0 0.0
    %451 = vmatprep.subr.mxu0 0.0
    %452 = vmatpush1.msra.mxu0 0.0
    %453 = vmatprep.subr.mxu0 0.0
    %454 = vmatpush1.msra.mxu0 0.0
    %455 = vmatprep.subr.mxu0 0.0
    %456 = vmatpush1.msra.mxu0 0.0
    %457 = vmatprep.subr.mxu0 0.0
    %458 = vmatpush1.msra.mxu0 0.0
    %459 = vmatprep.subr.mxu0 0.0
    %460 = vmatpush1.msra.mxu0 0.0
    %461 = vmatprep.subr.mxu0 0.0
    %462 = vmatpush1.msra.mxu0 0.0
    %463 = vmatprep.subr.mxu0 0.0
    %464 = vmatpush1.msra.mxu0 0.0
    %465 = vmatprep.subr.mxu0 0.0
    %466 = vmatpush1.msra.mxu0 0.0
    %467 = vmatprep.subr.mxu0 0.0
    %468 = vmatpush1.msra.mxu0 0.0
    %469 = vmatprep.subr.mxu0 0.0
    %470 = vmatpush1.msra.mxu0 0.0
    %471 = vmatprep.subr.mxu0 0.0
    %472 = vmatpush1.msra.mxu0 0.0
    %473 = vmatprep.subr.mxu0 0.0
    %474 = vmatpush1.msra.mxu0 0.0
    %475 = vmatprep.mubr.f32.mxu0 0.0
    %476 = vmatmul.mubr.f32.gmra.mrb[0].mxu0 %v409
    %v477 = vpop.f32.mrb[0].mxu0
    %v478 = vadd.f32 0.0, %v477
    %v479 = vpop.f32.mrb[0].mxu0
    %480 = vdwg.mxu0
    %v481 = vadd.f32 %v159, %v478
    %v482 = vtanh.pop %v481
    %v484 = vsel %vm182, %v482, 0
    %486 = vmatprep.subr.mxu0 0.0
    %487 = vmatpush1.msra.mxu0 %v177
    %488 = vmatprep.subr.mxu0 0.0
    %489 = vmatpush1.msra.mxu0 %v178
    %490 = vmatprep.subr.mxu0 0.0
    %491 = vmatpush1.msra.mxu0 %v179
    %492 = vmatprep.subr.mxu0 0.0
    %493 = vmatpush1.msra.mxu0 %v180
    %494 = vmatprep.subr.mxu0 0.0
    %495 = vmatpush1.msra.mxu0 0.0
    %496 = vmatprep.subr.mxu0 0.0
    %497 = vmatpush1.msra.mxu0 0.0
    %498 = vmatprep.subr.mxu0 0.0
    %499 = vmatpush1.msra.mxu0 0.0
    %500 = vmatprep.subr.mxu0 0.0
    %501 = vmatpush1.msra.mxu0 0.0
    %502 = vmatprep.subr.mxu0 0.0
    %503 = vmatpush1.msra.mxu0 0.0
    %504 = vmatprep.subr.mxu0 0.0
    %505 = vmatpush1.msra.mxu0 0.0
    %506 = vmatprep.subr.mxu0 0.0
    %507 = vmatpush1.msra.mxu0 0.0
    %508 = vmatprep.subr.mxu0 0.0
    %509 = vmatpush1.msra.mxu0 0.0
    %510 = vmatprep.subr.mxu0 0.0
    %511 = vmatpush1.msra.mxu0 0.0
    %512 = vmatprep.subr.mxu0 0.0
    %513 = vmatpush1.msra.mxu0 0.0
    %514 = vmatprep.subr.mxu0 0.0
    %515 = vmatpush1.msra.mxu0 0.0
    %516 = vmatprep.subr.mxu0 0.0
    %517 = vmatpush1.msra.mxu0 0.0
    %518 = vmatprep.subr.mxu0 0.0
    %519 = vmatpush1.msra.mxu0 0.0
    %520 = vmatprep.subr.mxu0 0.0
    %521 = vmatpush1.msra.mxu0 0.0
    %522 = vmatprep.subr.mxu0 0.0
    %523 = vmatpush1.msra.mxu0 0.0
    %524 = vmatprep.subr.mxu0 0.0
    %525 = vmatpush1.msra.mxu0 0.0
    %526 = vmatprep.subr.mxu0 0.0
    %527 = vmatpush1.msra.mxu0 0.0
    %528 = vmatprep.subr.mxu0 0.0
    %529 = vmatpush1.msra.mxu0 0.0
    %530 = vmatprep.subr.mxu0 0.0
    %531 = vmatpush1.msra.mxu0 0.0
    %532 = vmatprep.subr.mxu0 0.0
    %533 = vmatpush1.msra.mxu0 0.0
    %534 = vmatprep.subr.mxu0 0.0
    %535 = vmatpush1.msra.mxu0 0.0
    %536 = vmatprep.subr.mxu0 0.0
    %537 = vmatpush1.msra.mxu0 0.0
    %538 = vmatprep.subr.mxu0 0.0
    %539 = vmatpush1.msra.mxu0 0.0
    %540 = vmatprep.subr.mxu0 0.0
    %541 = vmatpush1.msra.mxu0 0.0
    %542 = vmatprep.subr.mxu0 0.0
    %543 = vmatpush1.msra.mxu0 0.0
    %544 = vmatprep.subr.mxu0 0.0
    %545 = vmatpush1.msra.mxu0 0.0
    %546 = vmatprep.subr.mxu0 0.0
    %547 = vmatpush1.msra.mxu0 0.0
    %548 = vmatprep.subr.mxu0 0.0
    %549 = vmatpush1.msra.mxu0 0.0
    %550 = vmatprep.mubr.f32.mxu0 0.0
    %551 = vmatmul.mubr.f32.gmra.mrb[0].mxu0 %v484
    %v552 = vpop.f32.mrb[0].mxu0
    %v553 = vadd.f32 0.0, %v552
    %v554 = vpop.f32.mrb[0].mxu0
    %555 = vdwg.mxu0
    %v556 = vadd.f32 %v164, %v553
    %v557 = vtanh.pop %v556
    %v559 = vsel %vm182, %v557, 0
    %561 = vmatprep.subr.mxu0 0.0
    %562 = vmatpush1.msra.mxu0 %v177
    %563 = vmatprep.subr.mxu0 0.0
    %564 = vmatpush1.msra.mxu0 %v178
    %565 = vmatprep.subr.mxu0 0.0
    %566 = vmatpush1.msra.mxu0 %v179
    %567 = vmatprep.subr.mxu0 0.0
    %568 = vmatpush1.msra.mxu0 %v180
    %569 = vmatprep.subr.mxu0 0.0
    %570 = vmatpush1.msra.mxu0 0.0
    %571 = vmatprep.subr.mxu0 0.0
    %572 = vmatpush1.msra.mxu0 0.0
    %573 = vmatprep.subr.mxu0 0.0
    %574 = vmatpush1.msra.mxu0 0.0
    %575 = vmatprep.subr.mxu0 0.0
    %576 = vmatpush1.msra.mxu0 0.0
    %577 = vmatprep.subr.mxu0 0.0
    %578 = vmatpush1.msra.mxu0 0.0
    %579 = vmatprep.subr.mxu0 0.0
    %580 = vmatpush1.msra.mxu0 0.0
    %581 = vmatprep.subr.mxu0 0.0
    %582 = vmatpush1.msra.mxu0 0.0
    %583 = vmatprep.subr.mxu0 0.0
    %584 = vmatpush1.msra.mxu0 0.0
    %585 = vmatprep.subr.mxu0 0.0
    %586 = vmatpush1.msra.mxu0 0.0
    %587 = vmatprep.subr.mxu0 0.0
    %588 = vmatpush1.msra.mxu0 0.0
    %589 = vmatprep.subr.mxu0 0.0
    %590 = vmatpush1.msra.mxu0 0.0
    %591 = vmatprep.subr.mxu0 0.0
    %592 = vmatpush1.msra.mxu0 0.0
    %593 = vmatprep.subr.mxu0 0.0
    %594 = vmatpush1.msra.mxu0 0.0
    %595 = vmatprep.subr.mxu0 0.0
    %596 = vmatpush1.msra.mxu0 0.0
    %597 = vmatprep.subr.mxu0 0.0
    %598 = vmatpush1.msra.mxu0 0.0
    %599 = vmatprep.subr.mxu0 0.0
    %600 = vmatpush1.msra.mxu0 0.0
    %601 = vmatprep.subr.mxu0 0.0
    %602 = vmatpush1.msra.mxu0 0.0
    %603 = vmatprep.subr.mxu0 0.0
    %604 = vmatpush1.msra.mxu0 0.0
    %605 = vmatprep.subr.mxu0 0.0
    %606 = vmatpush1.msra.mxu0 0.0
    %607 = vmatprep.subr.mxu0 0.0
    %608 = vmatpush1.msra.mxu0 0.0
    %609 = vmatprep.subr.mxu0 0.0
    %610 = vmatpush1.msra.mxu0 0.0
    %611 = vmatprep.subr.mxu0 0.0
    %612 = vmatpush1.msra.mxu0 0.0
    %613 = vmatprep.subr.mxu0 0.0
    %614 = vmatpush1.msra.mxu0 0.0
    %615 = vmatprep.subr.mxu0 0.0
    %616 = vmatpush1.msra.mxu0 0.0
    %617 = vmatprep.subr.mxu0 0.0
    %618 = vmatpush1.msra.mxu0 0.0
    %619 = vmatprep.subr.mxu0 0.0
    %620 = vmatpush1.msra.mxu0 0.0
    %621 = vmatprep.subr.mxu0 0.0
    %622 = vmatpush1.msra.mxu0 0.0
    %623 = vmatprep.subr.mxu0 0.0
    %624 = vmatpush1.msra.mxu0 0.0
    %625 = vmatprep.mubr.f32.mxu0 0.0
    %626 = vmatmul.mubr.f32.gmra.mrb[0].mxu0 %v559
    %v627 = vpop.f32.mrb[0].mxu0
    %v628 = vadd.f32 0.0, %v627
    %v629 = vpop.f32.mrb[0].mxu0
    %630 = vdwg.mxu0
    %v631 = vadd.f32 %v169, %v628
    %v632 = vtanh.pop %v631
    %v634 = vsel %vm182, %v632, 0
    %636 = vmatprep.subr.mxu0 0.0
    %637 = vmatpush1.msra.mxu0 %v177
    %638 = vmatprep.subr.mxu0 0.0
    %639 = vmatpush1.msra.mxu0 %v178
    %640 = vmatprep.subr.mxu0 0.0
    %641 = vmatpush1.msra.mxu0 %v179
    %642 = vmatprep.subr.mxu0 0.0
    %643 = vmatpush1.msra.mxu0 %v180
    %644 = vmatprep.subr.mxu0 0.0
    %645 = vmatpush1.msra.mxu0 0.0
    %646 = vmatprep.subr.mxu0 0.0
    %647 = vmatpush1.msra.mxu0 0.0
    %648 = vmatprep.subr.mxu0 0.0
    %649 = vmatpush1.msra.mxu0 0.0
    %650 = vmatprep.subr.mxu0 0.0
    %651 = vmatpush1.msra.mxu0 0.0
    %652 = vmatprep.subr.mxu0 0.0
    %653 = vmatpush1.msra.mxu0 0.0
    %654 = vmatprep.subr.mxu0 0.0
    %655 = vmatpush1.msra.mxu0 0.0
    %656 = vmatprep.subr.mxu0 0.0
    %657 = vmatpush1.msra.mxu0 0.0
    %658 = vmatprep.subr.mxu0 0.0
    %659 = vmatpush1.msra.mxu0 0.0
    %660 = vmatprep.subr.mxu0 0.0
    %661 = vmatpush1.msra.mxu0 0.0
    %662 = vmatprep.subr.mxu0 0.0
    %663 = vmatpush1.msra.mxu0 0.0
    %664 = vmatprep.subr.mxu0 0.0
    %665 = vmatpush1.msra.mxu0 0.0
    %666 = vmatprep.subr.mxu0 0.0
    %667 = vmatpush1.msra.mxu0 0.0
    %668 = vmatprep.subr.mxu0 0.0
    %669 = vmatpush1.msra.mxu0 0.0
    %670 = vmatprep.subr.mxu0 0.0
    %671 = vmatpush1.msra.mxu0 0.0
    %672 = vmatprep.subr.mxu0 0.0
    %673 = vmatpush1.msra.mxu0 0.0
    %674 = vmatprep.subr.mxu0 0.0
    %675 = vmatpush1.msra.mxu0 0.0
    %676 = vmatprep.subr.mxu0 0.0
    %677 = vmatpush1.msra.mxu0 0.0
    %678 = vmatprep.subr.mxu0 0.0
    %679 = vmatpush1.msra.mxu0 0.0
    %680 = vmatprep.subr.mxu0 0.0
    %681 = vmatpush1.msra.mxu0 0.0
    %682 = vmatprep.subr.mxu0 0.0
    %683 = vmatpush1.msra.mxu0 0.0
    %684 = vmatprep.subr.mxu0 0.0
    %685 = vmatpush1.msra.mxu0 0.0
    %686 = vmatprep.subr.mxu0 0.0
    %687 = vmatpush1.msra.mxu0 0.0
    %688 = vmatprep.subr.mxu0 0.0
    %689 = vmatpush1.msra.mxu0 0.0
    %690 = vmatprep.subr.mxu0 0.0
    %691 = vmatpush1.msra.mxu0 0.0
    %692 = vmatprep.subr.mxu0 0.0
    %693 = vmatpush1.msra.mxu0 0.0
    %694 = vmatprep.subr.mxu0 0.0
    %695 = vmatpush1.msra.mxu0 0.0
    %696 = vmatprep.subr.mxu0 0.0
    %697 = vmatpush1.msra.mxu0 0.0
    %698 = vmatprep.subr.mxu0 0.0
    %699 = vmatpush1.msra.mxu0 0.0
    %700 = vmatprep.mubr.f32.mxu0 0.0
    %701 = vmatmul.mubr.f32.gmra.mrb[0].mxu0 %v634
    %v702 = vpop.f32.mrb[0].mxu0
    %v703 = vadd.f32 0.0, %v702
    %v704 = vpop.f32.mrb[0].mxu0
    %705 = vdwg.mxu0
    %v706 = vadd.f32 %v174, %v703
    %v707 = vtanh.pop %v706
    %708 = vst.msk [vmem:[#allocation3] sm:$0xff] %vm182, %v707
    %v709 = vld [vmem:[%s4] sm:$0xff]
    %v710 = vld [vmem:[%s4 + $0x8] sm:$0xff]
    %v711 = vld [vmem:[%s4 + $0x10] sm:$0xff]
    %v712 = vld [vmem:[%s4 + $0x18] sm:$0xff]
    %s713 = sld [smem:[#allocation2]]
    %v714 = vstv %s713
    %v716 = vsel %vm182, %v707, 0
    %718 = vmatprep.subr.mxu0 0.0
    %719 = vmatpush1.msra.mxu0 %v709
    %720 = vmatprep.subr.mxu0 0.0
    %721 = vmatpush1.msra.mxu0 %v710
    %722 = vmatprep.subr.mxu0 0.0
    %723 = vmatpush1.msra.mxu0 %v711
    %724 = vmatprep.subr.mxu0 0.0
    %725 = vmatpush1.msra.mxu0 %v712
    %726 = vmatprep.subr.mxu0 0.0
    %727 = vmatpush1.msra.mxu0 0.0
    %728 = vmatprep.subr.mxu0 0.0
    %729 = vmatpush1.msra.mxu0 0.0
    %730 = vmatprep.subr.mxu0 0.0
    %731 = vmatpush1.msra.mxu0 0.0
    %732 = vmatprep.subr.mxu0 0.0
    %733 = vmatpush1.msra.mxu0 0.0
    %734 = vmatprep.subr.mxu0 0.0
    %735 = vmatpush1.msra.mxu0 0.0
    %736 = vmatprep.subr.mxu0 0.0
    %737 = vmatpush1.msra.mxu0 0.0
    %738 = vmatprep.subr.mxu0 0.0
    %739 = vmatpush1.msra.mxu0 0.0
    %740 = vmatprep.subr.mxu0 0.0
    %741 = vmatpush1.msra.mxu0 0.0
    %742 = vmatprep.subr.mxu0 0.0
    %743 = vmatpush1.msra.mxu0 0.0
    %744 = vmatprep.subr.mxu0 0.0
    %745 = vmatpush1.msra.mxu0 0.0
    %746 = vmatprep.subr.mxu0 0.0
    %747 = vmatpush1.msra.mxu0 0.0
    %748 = vmatprep.subr.mxu0 0.0
    %749 = vmatpush1.msra.mxu0 0.0
    %750 = vmatprep.subr.mxu0 0.0
    %751 = vmatpush1.msra.mxu0 0.0
    %752 = vmatprep.subr.mxu0 0.0
    %753 = vmatpush1.msra.mxu0 0.0
    %754 = vmatprep.subr.mxu0 0.0
    %755 = vmatpush1.msra.mxu0 0.0
    %756 = vmatprep.subr.mxu0 0.0
    %757 = vmatpush1.msra.mxu0 0.0
    %758 = vmatprep.subr.mxu0 0.0
    %759 = vmatpush1.msra.mxu0 0.0
    %760 = vmatprep.subr.mxu0 0.0
    %761 = vmatpush1.msra.mxu0 0.0
    %762 = vmatprep.subr.mxu0 0.0
    %763 = vmatpush1.msra.mxu0 0.0
    %764 = vmatprep.subr.mxu0 0.0
    %765 = vmatpush1.msra.mxu0 0.0
    %766 = vmatprep.subr.mxu0 0.0
    %767 = vmatpush1.msra.mxu0 0.0
    %768 = vmatprep.subr.mxu0 0.0
    %769 = vmatpush1.msra.mxu0 0.0
    %770 = vmatprep.subr.mxu0 0.0
    %771 = vmatpush1.msra.mxu0 0.0
    %772 = vmatprep.subr.mxu0 0.0
    %773 = vmatpush1.msra.mxu0 0.0
    %774 = vmatprep.subr.mxu0 0.0
    %775 = vmatpush1.msra.mxu0 0.0
    %776 = vmatprep.subr.mxu0 0.0
    %777 = vmatpush1.msra.mxu0 0.0
    %778 = vmatprep.subr.mxu0 0.0
    %779 = vmatpush1.msra.mxu0 0.0
    %780 = vmatprep.subr.mxu0 0.0
    %781 = vmatpush1.msra.mxu0 0.0
    %782 = vmatprep.mubr.f32.mxu0 0.0
    %783 = vmatmul.mubr.f32.gmra.mrb[0].mxu0 %v184
    %v784 = vpop.f32.mrb[0].mxu0
    %v785 = vadd.f32 %v714, %v784
    %v786 = vpop.f32.mrb[0].mxu0
    %787 = vmatprep.mubr.f32.mxu0 0.0
    %788 = vmatmul.mubr.f32.gmra.mrb[0].mxu0 %v259
    %v789 = vpop.f32.mrb[0].mxu0
    %v790 = vadd.f32 %v714, %v789
    %v791 = vpop.f32.mrb[0].mxu0
    %792 = vmatprep.mubr.f32.mxu0 0.0
    %793 = vmatmul.mubr.f32.gmra.mrb[0].mxu0 %v334
    %v794 = vpop.f32.mrb[0].mxu0
    %v795 = vadd.f32 %v714, %v794
    %v796 = vpop.f32.mrb[0].mxu0
    %797 = vmatprep.mubr.f32.mxu0 0.0
    %798 = vmatmul.mubr.f32.gmra.mrb[0].mxu0 %v409
    %v799 = vpop.f32.mrb[0].mxu0
    %v800 = vadd.f32 %v714, %v799
    %v801 = vpop.f32.mrb[0].mxu0
    %802 = vmatprep.mubr.f32.mxu0 0.0
    %803 = vmatmul.mubr.f32.gmra.mrb[0].mxu0 %v484
    %v804 = vpop.f32.mrb[0].mxu0
    %v805 = vadd.f32 %v714, %v804
    %v806 = vpop.f32.mrb[0].mxu0
    %807 = vmatprep.mubr.f32.mxu0 0.0
    %808 = vmatmul.mubr.f32.gmra.mrb[0].mxu0 %v559
    %v809 = vpop.f32.mrb[0].mxu0
    %v810 = vadd.f32 %v714, %v809
    %v811 = vpop.f32.mrb[0].mxu0
    %812 = vmatprep.mubr.f32.mxu0 0.0
    %813 = vmatmul.mubr.f32.gmra.mrb[0].mxu0 %v634
    %v814 = vpop.f32.mrb[0].mxu0
    %v815 = vadd.f32 %v714, %v814
    %v816 = vpop.f32.mrb[0].mxu0
    %817 = vmatprep.mubr.f32.mxu0 0.0
    %818 = vmatmul.mubr.f32.gmra.mrb[0].mxu0 %v716
    %v819 = vpop.f32.mrb[0].mxu0
    %v820 = vadd.f32 %v714, %v819
    %v821 = vpop.f32.mrb[0].mxu0
    %822 = vdwg.mxu0
    %vm823 = vcmask 7168
    %824 = vst.msk [vmem:[%s6] sm:$0xff] %vm823, %v785
    %825 = vst.msk [vmem:[%s6 + $0x8] sm:$0xff] %vm823, %v790
    %826 = vst.msk [vmem:[%s6 + $0x10] sm:$0xff] %vm823, %v795
    %827 = vst.msk [vmem:[%s6 + $0x18] sm:$0xff] %vm823, %v800
    %828 = vst.msk [vmem:[%s6 + $0x20] sm:$0xff] %vm823, %v805
    %829 = vst.msk [vmem:[%s6 + $0x28] sm:$0xff] %vm823, %v810
    %830 = vst.msk [vmem:[%s6 + $0x30] sm:$0xff] %vm823, %v815
    %831 = vst.msk [vmem:[%s6 + $0x38] sm:$0xff] %vm823, %v820
    // Predicated region
    $region26: #{tpu_custom_call.1} parent=1 // pred_check
      _
    $region27: #{tpu_custom_call.1} parent=1 // pred_check_branch
      %833 = sbr.rel (0) target = $region29
    $region28: #{tpu_custom_call.1} parent=1 // pred_region
      _
    $region29: #{tpu_custom_call.1} parent=1 // pred_fallthru
      _
    // Predicated region
    $region30: #{tpu_custom_call.1} parent=1 // pred_check
      _
    $region31: #{tpu_custom_call.1} parent=1 // pred_check_branch
      %835 = sbr.rel (0) target = $region33
    $region32: #{tpu_custom_call.1} parent=1 // pred_region
      %s837 = ssub.s32 128, 128
      %838 = vsyncadd [#allocation4], %s837
      %s840 = sshll.u32 [#allocation3], 4
      %s841 = int_to_ptr.vmem [resolvable:$true] %s840
      %843 = dma.vmem_to_hbm [thread:$0]  %s841, 128, %s7, [#allocation4]
    $region33: #{tpu_custom_call.1} parent=1 // pred_fallthru
      _
    // Predicated region
    $region34: #{tpu_custom_call.1} parent=1 // pred_check
      _
    $region35: #{tpu_custom_call.1} parent=1 // pred_check_branch
      %845 = sbr.rel (0) target = $region37
    $region36: #{tpu_custom_call.1} parent=1 // pred_region
      _
    $region37: #{tpu_custom_call.1} parent=1 // pred_fallthru
      _
    // Predicated region
    $region38: #{tpu_custom_call.1} parent=1 // pred_check
      _
    $region39: #{tpu_custom_call.1} parent=1 // pred_check_branch
      %847 = sbr.rel (0) target = $region41
    $region40: #{tpu_custom_call.1} parent=1 // pred_region
      %848 = dma.done [#allocation4], 128
    $region41: #{tpu_custom_call.1} parent=1 // pred_fallthru
      _
    %849 = vsyncpa [#allocation4], 1

</llo_original>
